<compile_context>
chip_gen: v6e
topology: v6e:2x2x1
jax: 0.10.0
libtpu: 0.0.40
codegen_flags: <defaults>
</compile_context>

<pallas_src>
import functools

import jax
import jax.numpy as jnp
from jax.experimental import pallas as pl
from jax.experimental.pallas import tpu as pltpu


def _round_up(x, m):
    return (x + m - 1) // m * m


def _gate_stride(hidden_size):
    """Column stride between gate slabs on the packed gate axis."""
    if hidden_size % 128 == 0 or hidden_size <= 256:
        return hidden_size                       # contiguous packing
    return _round_up(hidden_size, 128)           # 128-aligned slabs (large H)


def _stacked_gru_kernel(gate_stride, x_ref, h0_ref, wih_ref, whh_ref,
                        bih_ref, bhh_ref, h1_ref, carry_ref):
    """One grid step == one GRU layer.  carry_ref persists across layers.

    x_ref:    (B, in_size)       f32   external input (consumed at l==0)
    h0_ref:   (1, B, H)          f32   previous hidden state of this layer
    wih_ref:  (1, in_pad, Gp)    bf16  W_ih^T, gate g at cols [g*gs, g*gs+H)
    whh_ref:  (1, H, Gp)         bf16  W_hh^T
    bih_ref:  (1, 1, Gp)         f32
    bhh_ref:  (1, 1, Gp)         f32
    h1_ref:   (1, B, H)          f32   new hidden state of this layer
    carry_ref:(B, in_pad)        bf16  VMEM scratch: input to the next layer
    """
    layer = pl.program_id(0)
    num_layers = pl.num_programs(0)
    B, H = h0_ref.shape[1], h0_ref.shape[2]
    in_size = x_ref.shape[1]
    in_pad = carry_ref.shape[1]

    @pl.when(layer == 0)
    def _():
        # Layer 0 consumes the external input; zero any padding columns so no
        # stale data ever reaches later layers.
        if in_size < in_pad:
            carry_ref[...] = jnp.zeros_like(carry_ref)
        carry_ref[:, :in_size] = x_ref[...].astype(carry_ref.dtype)

    inp = carry_ref[...]                      # (B, in_pad) bf16
    h_prev = h0_ref[0]                        # (B, H)      f32

    # Two bf16 MXU matmuls compute all three gate pre-activations at once,
    # accumulated in f32.  (Small Gp here; tile the gate axis for huge H.)
    gi = jnp.dot(inp, wih_ref[0],
                 preferred_element_type=jnp.float32) + bih_ref[0]
    gh = jnp.dot(h_prev.astype(jnp.bfloat16), whh_ref[0],
                 preferred_element_type=jnp.float32) + bhh_ref[0]

    def gate(t, g):
        s = g * gate_stride
        return t[:, s:s + H]

    r = jax.nn.sigmoid(gate(gi, 0) + gate(gh, 0))
    z = jax.nn.sigmoid(gate(gi, 1) + gate(gh, 1))
    n = jnp.tanh(gate(gi, 2) + r * gate(gh, 2))
    h_new = (1.0 - z) * n + z * h_prev        # f32 epilogue

    h1_ref[0] = h_new

    # Carry for the next layer (eval-mode dropout == identity).
    @pl.when(layer + 1 < num_layers)
    def _():
        if H < in_pad:
            carry_ref[:, H:] = jnp.zeros((B, in_pad - H), carry_ref.dtype)
        carry_ref[:, :H] = h_new.astype(carry_ref.dtype)


@jax.jit
def stacked_gru_forward(x, hidden, packed):
    """StackedGRU.forward(input, hidden) -> (output, h_1).

    x:      (B, input_size)  f32
    hidden: (L, B, H)        f32
    packed: dict of stacked/padded bf16 weights + f32 biases (pack_* below)
    returns: output (B, H) f32 and h_1 (L, B, H) f32
    """
    L, B, H = hidden.shape
    in_size = x.shape[1]
    w_ih_t = packed["w_ih_t"]                 # (L, in_pad, Gp) bf16
    w_hh_t = packed["w_hh_t"]                 # (L, H, Gp)      bf16
    b_ih = packed["b_ih"]                     # (L, 1, Gp)      f32
    b_hh = packed["b_hh"]                     # (L, 1, Gp)      f32
    in_pad = w_ih_t.shape[1]
    Gp = w_ih_t.shape[2]
    gs = _gate_stride(H)

    # Scoped-VMEM budget: 2x (double-buffered) per-layer blocks + carry
    # scratch + headroom for internal scratch.  Capped at 64 MiB so it is
    # valid on every generation (v7x physical VMEM is 64 MiB per TC).
    block_bytes = (in_pad * Gp * 2 + H * Gp * 2 + 2 * Gp * 4 +
                   B * in_size * 4 + 2 * B * H * 4)
    vmem_limit = 2 * block_bytes + B * in_pad * 2 + (4 << 20)
    vmem_limit = int(min(max(vmem_limit, 4 << 20), 64 << 20))

    flops = 2 * L * B * (in_pad + H) * Gp
    transcendentals = L * B * 3 * H
    bytes_accessed = (w_ih_t.size * 2 + w_hh_t.size * 2 +
                      (b_ih.size + b_hh.size) * 4 +
                      x.size * 4 + 2 * hidden.size * 4)

    h_1 = pl.pallas_call(
        functools.partial(_stacked_gru_kernel, gs),
        out_shape=jax.ShapeDtypeStruct((L, B, H), jnp.float32),
        grid_spec=pltpu.PrefetchScalarGridSpec(
            num_scalar_prefetch=0,
            grid=(L,),
            in_specs=[
                pl.BlockSpec((B, in_size), lambda l: (0, 0)),        # x
                pl.BlockSpec((1, B, H), lambda l: (l, 0, 0)),        # h_0
                pl.BlockSpec((1, in_pad, Gp), lambda l: (l, 0, 0)),  # W_ih^T
                pl.BlockSpec((1, H, Gp), lambda l: (l, 0, 0)),       # W_hh^T
                pl.BlockSpec((1, 1, Gp), lambda l: (l, 0, 0)),       # b_ih
                pl.BlockSpec((1, 1, Gp), lambda l: (l, 0, 0)),       # b_hh
            ],
            out_specs=pl.BlockSpec((1, B, H), lambda l: (l, 0, 0)),  # h_1
            scratch_shapes=[pltpu.VMEM((B, in_pad), jnp.bfloat16)],
        ),
        compiler_params=pltpu.CompilerParams(
            dimension_semantics=("arbitrary",),   # layer axis is sequential
            vmem_limit_bytes=vmem_limit),
        cost_estimate=pl.CostEstimate(
            flops=flops, transcendentals=transcendentals,
            bytes_accessed=bytes_accessed),
    )(x, hidden, w_ih_t, w_hh_t, b_ih, b_hh)

    return h_1[L - 1], h_1


def init_stacked_gru_params(key, num_layers, input_size, hidden_size,
                            dtype=jnp.float32):
    """Deterministic PyTorch-style uniform(-1/sqrt(H), 1/sqrt(H)) init.

    Returns PyTorch-layout f32 params (used by the pure-JAX reference)."""
    params = []
    bound = 1.0 / (hidden_size ** 0.5)
    in_sz = input_size
    for _ in range(num_layers):
        key, k1, k2, k3, k4 = jax.random.split(key, 5)
        params.append(dict(
            w_ih=jax.random.uniform(k1, (3 * hidden_size, in_sz), dtype,
                                    minval=-bound, maxval=bound),
            w_hh=jax.random.uniform(k2, (3 * hidden_size, hidden_size), dtype,
                                    minval=-bound, maxval=bound),
            b_ih=jax.random.uniform(k3, (3 * hidden_size,), dtype,
                                    minval=-bound, maxval=bound),
            b_hh=jax.random.uniform(k4, (3 * hidden_size,), dtype,
                                    minval=-bound, maxval=bound),
        ))
        in_sz = hidden_size
    return params


def pack_stacked_gru_params(params, input_size, hidden_size):
    """Pad / transpose / stack per-layer params for the fused kernel.

    Gate order (r, z, n) is preserved; gate g occupies columns
    [g*gate_stride, g*gate_stride + H) of a single 128-lane-padded gate axis.
    Reduction (row) dims are padded only to the bf16 sublane (16), not 128,
    to minimize streamed HBM bytes.  Weights are stored in bf16."""
    L = len(params)
    H = hidden_size
    gs = _gate_stride(H)
    Gp = _round_up(3 * gs if gs == H else 3 * gs, 128)
    in_pad = _round_up(max(input_size, H), 16)

    w_ih_t = jnp.zeros((L, in_pad, Gp), jnp.bfloat16)
    w_hh_t = jnp.zeros((L, H, Gp), jnp.bfloat16)
    b_ih = jnp.zeros((L, 1, Gp), jnp.float32)
    b_hh = jnp.zeros((L, 1, Gp), jnp.float32)

    for i, p in enumerate(params):
        in_sz = input_size if i == 0 else H
        for g in range(3):                       # r, z, n
            rows = slice(g * H, (g + 1) * H)     # PyTorch row block of gate g
            cols = slice(g * gs, g * gs + H)
            w_ih_t = w_ih_t.at[i, :in_sz, cols].set(
                p["w_ih"][rows, :].T.astype(jnp.bfloat16))
            w_hh_t = w_hh_t.at[i, :, cols].set(
                p["w_hh"][rows, :].T.astype(jnp.bfloat16))
            b_ih = b_ih.at[i, 0, cols].set(p["b_ih"][rows])
            b_hh = b_hh.at[i, 0, cols].set(p["b_hh"][rows])

    return dict(w_ih_t=w_ih_t, w_hh_t=w_hh_t, b_ih=b_ih, b_hh=b_hh)


def _reference_forward(x, hidden, params):
    """Pure-JAX reference mirroring the kernel's bf16-operand / f32-accumulate
    numerics (PyTorch GRUCell gate math)."""
    H = hidden.shape[-1]
    inp = x.astype(jnp.bfloat16)
    h_1 = []
    for i, p in enumerate(params):
        w_ih = p["w_ih"].astype(jnp.bfloat16)
        w_hh = p["w_hh"].astype(jnp.bfloat16)
        gi = jnp.dot(inp, w_ih.T,
                     preferred_element_type=jnp.float32) + p["b_ih"]
        gh = jnp.dot(hidden[i].astype(jnp.bfloat16), w_hh.T,
                     preferred_element_type=jnp.float32) + p["b_hh"]
        r = jax.nn.sigmoid(gi[:, :H] + gh[:, :H])
        z = jax.nn.sigmoid(gi[:, H:2 * H] + gh[:, H:2 * H])
        n = jnp.tanh(gi[:, 2 * H:] + r * gh[:, 2 * H:])
        h_new = (1.0 - z) * n + z * hidden[i]
        h_1.append(h_new)
        inp = h_new.astype(jnp.bfloat16)         # next-layer input (bf16 carry)
    return h_1[-1], jnp.stack(h_1, axis=0)


if __name__ == "__main__":
    num_layers = 2
    batch = 4
    input_size = 16
    hidden_size = 32

    key = jax.random.PRNGKey(0)
    k_params, k_x, k_h = jax.random.split(key, 3)

    params = init_stacked_gru_params(k_params, num_layers, input_size,
                                     hidden_size)
    packed = pack_stacked_gru_params(params, input_size, hidden_size)

    x = jax.random.normal(k_x, (batch, input_size), jnp.float32)
    hidden = jax.random.normal(k_h, (num_layers, batch, hidden_size),
                               jnp.float32)

    out, h_1 = stacked_gru_forward(x, hidden, packed)
    out = jax.block_until_ready(out)
    h_1 = jax.block_until_ready(h_1)

    ref_out, ref_h1 = _reference_forward(x, hidden, params)
    assert out.shape == (batch, hidden_size)
    assert h_1.shape == (num_layers, batch, hidden_size)
    assert jnp.allclose(out, ref_out, atol=2e-3, rtol=2e-3)
    assert jnp.allclose(h_1, ref_h1, atol=2e-3, rtol=2e-3)

    print("KERNEL_OK")
</pallas_src>

<mosaic_0001>
module attributes {stable_mosaic.version = 11 : i64} {
  func.func @_stacked_gru_kernel(%arg0: i32, %arg1: memref<4x16xf32, #tpu.memory_space<vmem>>, %arg2: memref<1x4x32xf32, #tpu.memory_space<vmem>>, %arg3: memref<1x32x128xbf16, #tpu.memory_space<vmem>>, %arg4: memref<1x32x128xbf16, #tpu.memory_space<vmem>>, %arg5: memref<1x1x128xf32, #tpu.memory_space<vmem>>, %arg6: memref<1x1x128xf32, #tpu.memory_space<vmem>>, %arg7: memref<1x4x32xf32, #tpu.memory_space<vmem>>, %arg8: memref<4x32xbf16, #tpu.memory_space<vmem>>) attributes {dimension_semantics = [#tpu.dimension_semantics<arbitrary>], iteration_bounds = array<i64: 2>, scalar_prefetch = 0 : i64, scratch_operands = 1 : i64, tpu.core_type = #tpu.core_type<tc>, window_params = [{pipeline_mode = #tpu.pipeline_mode<synchronous>, transform_indices = @transform_0, window_bounds = array<i64: 4, 16>}, {transform_indices = @transform_1, window_bounds = array<i64: 1, 4, 32>}, {transform_indices = @transform_2, window_bounds = array<i64: 1, 32, 128>}, {transform_indices = @transform_3, window_bounds = array<i64: 1, 32, 128>}, {transform_indices = @transform_4, window_bounds = array<i64: 1, 1, 128>}, {transform_indices = @transform_5, window_bounds = array<i64: 1, 1, 128>}, {transform_indices = @transform_6, window_bounds = array<i64: 1, 4, 32>}]} {
    %c0_i32 = arith.constant 0 : i32
    %0 = arith.cmpi eq, %arg0, %c0_i32 : i32
    %1 = arith.extui %0 : i1 to i32
    %c0_i32_0 = arith.constant 0 : i32
    %2 = arith.cmpi ne, %1, %c0_i32_0 : i32
    scf.if %2 {
      %cst_25 = arith.constant 0.000000e+00 : bf16
      %54 = vector.broadcast %cst_25 : bf16 to vector<4x32xbf16>
      %c0_26 = arith.constant 0 : index
      %c0_27 = arith.constant 0 : index
      %55 = vector.load %arg8[%c0_26, %c0_27] : memref<4x32xbf16, #tpu.memory_space<vmem>>, vector<4x32xbf16>
      tpu.vector_store %arg8[%c0_26, %c0_27], %54 {strides = array<i32>} : memref<4x32xbf16, #tpu.memory_space<vmem>>, vector<4x32xbf16>,
      %c0_28 = arith.constant 0 : index
      %c0_29 = arith.constant 0 : index
      %56 = vector.load %arg1[%c0_28, %c0_29] : memref<4x16xf32, #tpu.memory_space<vmem>>, vector<4x16xf32>
      %57 = arith.truncf %56 : vector<4x16xf32> to vector<4x16xbf16>
      %c0_30 = arith.constant 0 : index
      %c0_31 = arith.constant 0 : index
      %58 = vector.load %arg8[%c0_30, %c0_31] : memref<4x32xbf16, #tpu.memory_space<vmem>>, vector<4x16xbf16>
      tpu.vector_store %arg8[%c0_30, %c0_31], %57 {strides = array<i32>} : memref<4x32xbf16, #tpu.memory_space<vmem>>, vector<4x16xbf16>,
    } else {
    }
    %c0 = arith.constant 0 : index
    %c0_1 = arith.constant 0 : index
    %3 = vector.load %arg8[%c0, %c0_1] : memref<4x32xbf16, #tpu.memory_space<vmem>>, vector<4x32xbf16>
    %c0_2 = arith.constant 0 : index
    %c0_3 = arith.constant 0 : index
    %c0_4 = arith.constant 0 : index
    %4 = vector.load %arg2[%c0_2, %c0_3, %c0_4] : memref<1x4x32xf32, #tpu.memory_space<vmem>>, vector<1x4x32xf32>
    %5 = vector.shape_cast %4 : vector<1x4x32xf32> to vector<4x32xf32>
    %c0_5 = arith.constant 0 : index
    %c0_6 = arith.constant 0 : index
    %c0_7 = arith.constant 0 : index
    %6 = vector.load %arg3[%c0_5, %c0_6, %c0_7] : memref<1x32x128xbf16, #tpu.memory_space<vmem>>, vector<1x32x128xbf16>
    %7 = vector.shape_cast %6 : vector<1x32x128xbf16> to vector<32x128xbf16>
    %cst = arith.constant dense<0.000000e+00> : vector<4x128xf32>
    %8 = tpu.matmul %3, %7, %cst {dimension_numbers = #tpu.dot_dimension_numbers<[1], [0], [0], [1], [0, 0, 1, 1], [], []>} : vector<4x32xbf16>, vector<32x128xbf16>, vector<4x128xf32> -> vector<4x128xf32>
    %c0_8 = arith.constant 0 : index
    %c0_9 = arith.constant 0 : index
    %c0_10 = arith.constant 0 : index
    %9 = vector.load %arg5[%c0_8, %c0_9, %c0_10] : memref<1x1x128xf32, #tpu.memory_space<vmem>>, vector<1x1x128xf32>
    %10 = vector.shape_cast %9 : vector<1x1x128xf32> to vector<1x128xf32>
    %11 = vector.broadcast %10 : vector<1x128xf32> to vector<4x128xf32>
    %12 = arith.addf %8, %11 : vector<4x128xf32>
    %13 = arith.truncf %5 : vector<4x32xf32> to vector<4x32xbf16>
    %c0_11 = arith.constant 0 : index
    %c0_12 = arith.constant 0 : index
    %c0_13 = arith.constant 0 : index
    %14 = vector.load %arg4[%c0_11, %c0_12, %c0_13] : memref<1x32x128xbf16, #tpu.memory_space<vmem>>, vector<1x32x128xbf16>
    %15 = vector.shape_cast %14 : vector<1x32x128xbf16> to vector<32x128xbf16>
    %cst_14 = arith.constant dense<0.000000e+00> : vector<4x128xf32>
    %16 = tpu.matmul %13, %15, %cst_14 {dimension_numbers = #tpu.dot_dimension_numbers<[1], [0], [0], [1], [0, 0, 1, 1], [], []>} : vector<4x32xbf16>, vector<32x128xbf16>, vector<4x128xf32> -> vector<4x128xf32>
    %c0_15 = arith.constant 0 : index
    %c0_16 = arith.constant 0 : index
    %c0_17 = arith.constant 0 : index
    %17 = vector.load %arg6[%c0_15, %c0_16, %c0_17] : memref<1x1x128xf32, #tpu.memory_space<vmem>>, vector<1x1x128xf32>
    %18 = vector.shape_cast %17 : vector<1x1x128xf32> to vector<1x128xf32>
    %19 = vector.broadcast %18 : vector<1x128xf32> to vector<4x128xf32>
    %20 = arith.addf %16, %19 : vector<4x128xf32>
    %21 = vector.extract_strided_slice %12 {offsets = [0, 0], sizes = [4, 32], strides = [1, 1]} : vector<4x128xf32> to vector<4x32xf32>
    %22 = vector.extract_strided_slice %20 {offsets = [0, 0], sizes = [4, 32], strides = [1, 1]} : vector<4x128xf32> to vector<4x32xf32>
    %23 = arith.addf %21, %22 : vector<4x32xf32>
    %24 = arith.negf %23 : vector<4x32xf32>
    %25 = math.exp %24 : vector<4x32xf32>
    %cst_18 = arith.constant 1.000000e+00 : f32
    %26 = vector.broadcast %cst_18 : f32 to vector<4x32xf32>
    %27 = arith.addf %26, %25 : vector<4x32xf32>
    %28 = arith.divf %26, %27 : vector<4x32xf32>
    %29 = vector.extract_strided_slice %12 {offsets = [0, 32], sizes = [4, 32], strides = [1, 1]} : vector<4x128xf32> to vector<4x32xf32>
    %30 = vector.extract_strided_slice %20 {offsets = [0, 32], sizes = [4, 32], strides = [1, 1]} : vector<4x128xf32> to vector<4x32xf32>
    %31 = arith.addf %29, %30 : vector<4x32xf32>
    %32 = arith.negf %31 : vector<4x32xf32>
    %33 = math.exp %32 : vector<4x32xf32>
    %cst_19 = arith.constant 1.000000e+00 : f32
    %34 = vector.broadcast %cst_19 : f32 to vector<4x32xf32>
    %35 = arith.addf %34, %33 : vector<4x32xf32>
    %36 = arith.divf %34, %35 : vector<4x32xf32>
    %37 = vector.extract_strided_slice %12 {offsets = [0, 64], sizes = [4, 32], strides = [1, 1]} : vector<4x128xf32> to vector<4x32xf32>
    %38 = vector.extract_strided_slice %20 {offsets = [0, 64], sizes = [4, 32], strides = [1, 1]} : vector<4x128xf32> to vector<4x32xf32>
    %39 = arith.mulf %28, %38 : vector<4x32xf32>
    %40 = arith.addf %37, %39 : vector<4x32xf32>
    %41 = math.tanh %40 : vector<4x32xf32>
    %cst_20 = arith.constant 1.000000e+00 : f32
    %42 = vector.broadcast %cst_20 : f32 to vector<4x32xf32>
    %43 = arith.subf %42, %36 : vector<4x32xf32>
    %44 = arith.mulf %43, %41 : vector<4x32xf32>
    %45 = arith.mulf %36, %5 : vector<4x32xf32>
    %46 = arith.addf %44, %45 : vector<4x32xf32>
    %c0_21 = arith.constant 0 : index
    %c0_22 = arith.constant 0 : index
    %c0_23 = arith.constant 0 : index
    %47 = vector.load %arg7[%c0_21, %c0_22, %c0_23] : memref<1x4x32xf32, #tpu.memory_space<vmem>>, vector<1x4x32xf32>
    %48 = vector.shape_cast %47 : vector<1x4x32xf32> to vector<4x32xf32>
    %49 = vector.shape_cast %46 : vector<4x32xf32> to vector<1x4x32xf32>
    tpu.vector_store %arg7[%c0_21, %c0_22, %c0_23], %49 {strides = array<i32>} : memref<1x4x32xf32, #tpu.memory_space<vmem>>, vector<1x4x32xf32>,
    %c1_i32 = arith.constant 1 : i32
    %50 = arith.addi %arg0, %c1_i32 : i32
    %c2_i32 = arith.constant 2 : i32
    %51 = arith.cmpi slt, %50, %c2_i32 : i32
    %52 = arith.extui %51 : i1 to i32
    %c0_i32_24 = arith.constant 0 : i32
    %53 = arith.cmpi ne, %52, %c0_i32_24 : i32
    scf.if %53 {
      %54 = arith.truncf %46 : vector<4x32xf32> to vector<4x32xbf16>
      %c0_25 = arith.constant 0 : index
      %c0_26 = arith.constant 0 : index
      %55 = vector.load %arg8[%c0_25, %c0_26] : memref<4x32xbf16, #tpu.memory_space<vmem>>, vector<4x32xbf16>
      tpu.vector_store %arg8[%c0_25, %c0_26], %54 {strides = array<i32>} : memref<4x32xbf16, #tpu.memory_space<vmem>>, vector<4x32xbf16>,
    } else {
    }
    return
  }
  func.func @transform_0(%arg0: i32) -> (i32, i32) {
    %c0_i32 = arith.constant 0 : i32
    %c0_i32_0 = arith.constant 0 : i32
    %c0_i32_1 = arith.constant 0 : i32
    return %c0_i32, %c0_i32_0 : i32, i32
  }
  func.func @transform_1(%arg0: i32) -> (i32, i32, i32) {
    %c0_i32 = arith.constant 0 : i32
    %c0_i32_0 = arith.constant 0 : i32
    %c0_i32_1 = arith.constant 0 : i32
    return %arg0, %c0_i32, %c0_i32_0 : i32, i32, i32
  }
  func.func @transform_2(%arg0: i32) -> (i32, i32, i32) {
    %c0_i32 = arith.constant 0 : i32
    %c0_i32_0 = arith.constant 0 : i32
    %c0_i32_1 = arith.constant 0 : i32
    return %arg0, %c0_i32, %c0_i32_0 : i32, i32, i32
  }
  func.func @transform_3(%arg0: i32) -> (i32, i32, i32) {
    %c0_i32 = arith.constant 0 : i32
    %c0_i32_0 = arith.constant 0 : i32
    %c0_i32_1 = arith.constant 0 : i32
    return %arg0, %c0_i32, %c0_i32_0 : i32, i32, i32
  }
  func.func @transform_4(%arg0: i32) -> (i32, i32, i32) {
    %c0_i32 = arith.constant 0 : i32
    %c0_i32_0 = arith.constant 0 : i32
    %c0_i32_1 = arith.constant 0 : i32
    return %arg0, %c0_i32, %c0_i32_0 : i32, i32, i32
  }
  func.func @transform_5(%arg0: i32) -> (i32, i32, i32) {
    %c0_i32 = arith.constant 0 : i32
    %c0_i32_0 = arith.constant 0 : i32
    %c0_i32_1 = arith.constant 0 : i32
    return %arg0, %c0_i32, %c0_i32_0 : i32, i32, i32
  }
  func.func @transform_6(%arg0: i32) -> (i32, i32, i32) {
    %c0_i32 = arith.constant 0 : i32
    %c0_i32_0 = arith.constant 0 : i32
    %c0_i32_1 = arith.constant 0 : i32
    return %arg0, %c0_i32, %c0_i32_0 : i32, i32, i32
  }
}

</mosaic_0001>

<llo_original>
// kernel: stacked_gru_forward.1
$region0: #{stacked_gru_forward.1}
  #allocation0 [shape = 'u32[]', space=smem, size = 0x4, offset = 0x4, fixed_abs, tag = 'smem constant byte address 0x4 - core index']
  #allocation1 [shape = 'u32[144,128]{1,0:T(1,128)}', space=vmem, size = 0x12000, scoped, tag = 'internal scratch']
  #allocation2 [shape = 'bf16[4,32]{1,0:T(4,128)(2,1)}', space=vmem, size = 0x400, scoped, tag = 'scratch operand']
  %s0 = inlined_call_operand.hbm [shape: f32[4,16], index: 0, kind: input, shape index: {}]
  %s1 = inlined_call_operand.hbm [shape: f32[2,4,32], index: 1, kind: input, shape index: {}]
  %s2 = inlined_call_operand.hbm [shape: bf16[2,32,128], index: 2, kind: input, shape index: {}]
  %s3 = inlined_call_operand.hbm [shape: bf16[2,32,128], index: 3, kind: input, shape index: {}]
  %s4 = inlined_call_operand.vmem [shape: f32[2,1,128], index: 4, kind: input, shape index: {}]
  %s5 = inlined_call_operand.hbm [shape: f32[2,1,128], index: 5, kind: input, shape index: {}]
  %s6 = inlined_call_operand.vmem [shape: f32[2,4,32], index: 6, kind: output, shape index: {}]
  %s7 = sld [smem:[#allocation0]]
  $region85: #{stacked_gru_forward.1} parent=0
    _
  %s9 = ssub.s32 1, %s7
  %s10 = scalar_select 0, %s9, %s7
  $region1: #{stacked_gru_forward.1} parent=0
    #allocation3 [shape = 'u8[2048]{0}', space=vmem, size = 0x800, scoped, tag = 'input window, operand 0, single buffered']
    #allocation4 [shape = 's32[2]{0}', space=sflag, size = 0x8, scoped, tag = 'scoped memory for stacked_gru_forward.1']
    #allocation5 [shape = 'u8[4096]{0}', space=vmem, size = 0x1000, scoped, tag = 'input window, operand 1']
    #allocation6 [shape = 's32[2]{0}', space=sflag, size = 0x8, scoped, tag = 'scoped memory for stacked_gru_forward.1']
    #allocation7 [shape = 'u8[16384]{0}', space=vmem, size = 0x4000, scoped, tag = 'input window, operand 2']
    #allocation8 [shape = 'u8[16384]{0}', space=vmem, size = 0x4000, scoped, tag = 'input window, operand 3']
    #allocation9 [shape = 's32[2]{0}', space=sflag, size = 0x8, scoped, tag = 'scoped memory for stacked_gru_forward.1']
    #allocation10 [shape = 'u8[1024]{0}', space=vmem, size = 0x400, scoped, tag = 'input window, operand 5']
    %11 = vsyncpa [#allocation4], 0
    %12 = vsyncpa [#allocation6], 0
    %s13 = scalar_lea.sflag [#allocation6], 1
    %14 = vsyncpa %s13, 0
    %15 = vsyncpa [#allocation9], 0
    %s16 = scalar_lea.sflag [#allocation9], 1
    %17 = vsyncpa %s16, 0
    loop: start=0, step=1, limit=4
    $region2: #{stacked_gru_forward.1} parent=1 // loop_pre_header
      _
    $region3: #{stacked_gru_forward.1} parent=1 // loop_header
      %s19 = sphi 0, %s23
      %p20 = scmp.ge.s32.totalorder %s19, 4
      %s27 = sphi 0, %s27
      %s29 = sphi 0, %s27
      %s30 = sphi 0, %s29
      %s44 = sphi 0, %s30
      %s50 = sphi 0, %s52
      %s53 = sphi 0, %s50
      %s54 = sphi 0, %s53
      %s70 = sphi 0, %s54
      %s76 = sphi 0, %s78
      %s79 = sphi 0, %s76
      %s80 = sphi 0, %s79
      %s96 = sphi 0, %s80
      %s102 = sphi 0, %s104
      %s105 = sphi 0, %s102
      %s106 = sphi 0, %s105
      %s122 = sphi 0, %s106
      %s128 = sphi 0, %s130
      %s131 = sphi 0, %s128
      %s132 = sphi 0, %s131
      %s148 = sphi 0, %s132
      %s154 = sphi 0, %s156
      %s157 = sphi 0, %s154
      %s158 = sphi 0, %s157
      %s174 = sphi 0, %s158
      %s180 = sphi 0, %s182
      %s183 = sphi 0, %s180
      %s184 = sphi 0, %s183
      %s200 = sphi 0, %s184
    $region4: #{stacked_gru_forward.1} parent=1 // loop_header_branch
      %22 = sbr.rel (%p20) target = $region8
    $region5: #{stacked_gru_forward.1} parent=1 // loop_body
      %s24 = ssub.s32 %s19, 1
      %s25 = ssub.s32 %s19, 2
      %s26 = sadd.s32 %s19, 1
      %s28 = sadd.s32 %s27, 1
      %p31 = scmp.eq.s32.totalorder %s19, 1
      %p32 = scmp.ne.s32.totalorder %s27, %s29
      %p33 = scmp.eq.s32.totalorder %s19, 0
      %p34 = por %p32, %p33
      %p35 = scmp.ne.s32.totalorder %s27, %s29
      %p36 = scmp.eq.s32.totalorder %s24, 1
      %p37 = por %p35, %p36
      %p38 = scmp.ne.s32.totalorder %s29, %s30
      %p39 = scmp.eq.s32.totalorder %s24, 0
      %p40 = por %p38, %p39
      %p41 = scmp.ne.s32.totalorder %s29, %s30
      %p42 = scmp.eq.s32.totalorder %s25, 1
      %p43 = por %p41, %p42
      %p45 = scmp.ne.s32.totalorder %s30, %s44
      %p46 = scmp.eq.s32.totalorder %s25, 0
      %p47 = por %p45, %p46
      %s48 = ssub.s32 %s19, %s26
      %p49 = scmp.eq.s32.totalorder %s48, 0
      %s51 = sadd.s32 %s50, 1
      %s52 = scalar_select %p49, %s50, %s51
      %p55 = pneg %p49
      %p56 = scmp.eq.s32.totalorder %s19, 1
      %p57 = por %p55, %p56
      %p58 = scmp.ne.s32.totalorder %s50, %s53
      %p59 = scmp.eq.s32.totalorder %s19, 0
      %p60 = por %p58, %p59
      %p61 = scmp.ne.s32.totalorder %s50, %s53
      %p62 = scmp.eq.s32.totalorder %s24, 1
      %p63 = por %p61, %p62
      %p64 = scmp.ne.s32.totalorder %s53, %s54
      %p65 = scmp.eq.s32.totalorder %s24, 0
      %p66 = por %p64, %p65
      %p67 = scmp.ne.s32.totalorder %s53, %s54
      %p68 = scmp.eq.s32.totalorder %s25, 1
      %p69 = por %p67, %p68
      %p71 = scmp.ne.s32.totalorder %s54, %s70
      %p72 = scmp.eq.s32.totalorder %s25, 0
      %p73 = por %p71, %p72
      %s74 = ssub.s32 %s19, %s26
      %p75 = scmp.eq.s32.totalorder %s74, 0
      %s77 = sadd.s32 %s76, 1
      %s78 = scalar_select %p75, %s76, %s77
      %p81 = pneg %p75
      %p82 = scmp.eq.s32.totalorder %s19, 1
      %p83 = por %p81, %p82
      %p84 = scmp.ne.s32.totalorder %s76, %s79
      %p85 = scmp.eq.s32.totalorder %s19, 0
      %p86 = por %p84, %p85
      %p87 = scmp.ne.s32.totalorder %s76, %s79
      %p88 = scmp.eq.s32.totalorder %s24, 1
      %p89 = por %p87, %p88
      %p90 = scmp.ne.s32.totalorder %s79, %s80
      %p91 = scmp.eq.s32.totalorder %s24, 0
      %p92 = por %p90, %p91
      %p93 = scmp.ne.s32.totalorder %s79, %s80
      %p94 = scmp.eq.s32.totalorder %s25, 1
      %p95 = por %p93, %p94
      %p97 = scmp.ne.s32.totalorder %s80, %s96
      %p98 = scmp.eq.s32.totalorder %s25, 0
      %p99 = por %p97, %p98
      %s100 = ssub.s32 %s19, %s26
      %p101 = scmp.eq.s32.totalorder %s100, 0
      %s103 = sadd.s32 %s102, 1
      %s104 = scalar_select %p101, %s102, %s103
      %p107 = pneg %p101
      %p108 = scmp.eq.s32.totalorder %s19, 1
      %p109 = por %p107, %p108
      %p110 = scmp.ne.s32.totalorder %s102, %s105
      %p111 = scmp.eq.s32.totalorder %s19, 0
      %p112 = por %p110, %p111
      %p113 = scmp.ne.s32.totalorder %s102, %s105
      %p114 = scmp.eq.s32.totalorder %s24, 1
      %p115 = por %p113, %p114
      %p116 = scmp.ne.s32.totalorder %s105, %s106
      %p117 = scmp.eq.s32.totalorder %s24, 0
      %p118 = por %p116, %p117
      %p119 = scmp.ne.s32.totalorder %s105, %s106
      %p120 = scmp.eq.s32.totalorder %s25, 1
      %p121 = por %p119, %p120
      %p123 = scmp.ne.s32.totalorder %s106, %s122
      %p124 = scmp.eq.s32.totalorder %s25, 0
      %p125 = por %p123, %p124
      %s126 = ssub.s32 %s19, %s26
      %p127 = scmp.eq.s32.totalorder %s126, 0
      %s129 = sadd.s32 %s128, 1
      %s130 = scalar_select %p127, %s128, %s129
      %p133 = pneg %p127
      %p134 = scmp.eq.s32.totalorder %s19, 1
      %p135 = por %p133, %p134
      %p136 = scmp.ne.s32.totalorder %s128, %s131
      %p137 = scmp.eq.s32.totalorder %s19, 0
      %p138 = por %p136, %p137
      %p139 = scmp.ne.s32.totalorder %s128, %s131
      %p140 = scmp.eq.s32.totalorder %s24, 1
      %p141 = por %p139, %p140
      %p142 = scmp.ne.s32.totalorder %s131, %s132
      %p143 = scmp.eq.s32.totalorder %s24, 0
      %p144 = por %p142, %p143
      %p145 = scmp.ne.s32.totalorder %s131, %s132
      %p146 = scmp.eq.s32.totalorder %s25, 1
      %p147 = por %p145, %p146
      %p149 = scmp.ne.s32.totalorder %s132, %s148
      %p150 = scmp.eq.s32.totalorder %s25, 0
      %p151 = por %p149, %p150
      %s152 = ssub.s32 %s19, %s26
      %p153 = scmp.eq.s32.totalorder %s152, 0
      %s155 = sadd.s32 %s154, 1
      %s156 = scalar_select %p153, %s154, %s155
      %p159 = pneg %p153
      %p160 = scmp.eq.s32.totalorder %s19, 1
      %p161 = por %p159, %p160
      %p162 = scmp.ne.s32.totalorder %s154, %s157
      %p163 = scmp.eq.s32.totalorder %s19, 0
      %p164 = por %p162, %p163
      %p165 = scmp.ne.s32.totalorder %s154, %s157
      %p166 = scmp.eq.s32.totalorder %s24, 1
      %p167 = por %p165, %p166
      %p168 = scmp.ne.s32.totalorder %s157, %s158
      %p169 = scmp.eq.s32.totalorder %s24, 0
      %p170 = por %p168, %p169
      %p171 = scmp.ne.s32.totalorder %s157, %s158
      %p172 = scmp.eq.s32.totalorder %s25, 1
      %p173 = por %p171, %p172
      %p175 = scmp.ne.s32.totalorder %s158, %s174
      %p176 = scmp.eq.s32.totalorder %s25, 0
      %p177 = por %p175, %p176
      %s178 = ssub.s32 %s19, %s26
      %p179 = scmp.eq.s32.totalorder %s178, 0
      %s181 = sadd.s32 %s180, 1
      %s182 = scalar_select %p179, %s180, %s181
      %p185 = pneg %p179
      %p186 = scmp.eq.s32.totalorder %s19, 1
      %p187 = por %p185, %p186
      %p188 = scmp.ne.s32.totalorder %s180, %s183
      %p189 = scmp.eq.s32.totalorder %s19, 0
      %p190 = por %p188, %p189
      %p191 = scmp.ne.s32.totalorder %s180, %s183
      %p192 = scmp.eq.s32.totalorder %s24, 1
      %p193 = por %p191, %p192
      %p194 = scmp.ne.s32.totalorder %s183, %s184
      %p195 = scmp.eq.s32.totalorder %s24, 0
      %p196 = por %p194, %p195
      %p197 = scmp.ne.s32.totalorder %s183, %s184
      %p198 = scmp.eq.s32.totalorder %s25, 1
      %p199 = por %p197, %p198
      %p201 = scmp.ne.s32.totalorder %s184, %s200
      %p202 = scmp.eq.s32.totalorder %s25, 0
      %p203 = por %p201, %p202
      %p204 = scmp.le.s32.totalorder 1, %s19
      %p205 = scmp.lt.s32.totalorder %s19, 3
      %p206 = pnand %p204, %p205
      %p207 = pneg %p206
      // Predicated region
      $region9: #{stacked_gru_forward.1} parent=5 // pred_check
        _
      $region10: #{stacked_gru_forward.1} parent=5 // pred_check_branch
        %209 = sbr.rel (%p206) target = $region12
      $region11: #{stacked_gru_forward.1} parent=5 // pred_region
        %s210 = ssub.s32 %s19, 1
        // Predicated region
        $region13: #{stacked_gru_forward.1} parent=11 // pred_check
          %p211 = pneg %p40
        $region14: #{stacked_gru_forward.1} parent=11 // pred_check_branch
          %213 = sbr.rel (%p211) target = $region16
        $region15: #{stacked_gru_forward.1} parent=11 // pred_region
          %s215 = ssub.s32 64, 64
          %216 = vsyncadd [#allocation4], %s215
          %s218 = sshll.u32 [#allocation3], 4
          %s219 = int_to_ptr.vmem [resolvable:$true] %s218
          %221 = dma.hbm_to_vmem [thread:$0]  %s0, 64, %s219, [#allocation4]
        $region16: #{stacked_gru_forward.1} parent=11 // pred_fallthru
          _
      $region12: #{stacked_gru_forward.1} parent=5 // pred_fallthru
        _
      %p222 = scmp.lt.s32.totalorder %s19, 2
      // Predicated region
      $region17: #{stacked_gru_forward.1} parent=5 // pred_check
        %p223 = pneg %p222
      $region18: #{stacked_gru_forward.1} parent=5 // pred_check_branch
        %225 = sbr.rel (%p223) target = $region20
      $region19: #{stacked_gru_forward.1} parent=5 // pred_region
        // Predicated region
        $region21: #{stacked_gru_forward.1} parent=19 // pred_check
          %p226 = pneg %p60
        $region22: #{stacked_gru_forward.1} parent=19 // pred_check_branch
          %228 = sbr.rel (%p226) target = $region24
        $region23: #{stacked_gru_forward.1} parent=19 // pred_region
          %s229 = sand.u32 %s19, 1
          %s230 = scalar_lea.sflag [#allocation6], %s229
          %s231 = sand.u32 %s50, 1
          %s232 = smul.addr %s231, 4
          %s233 = scalar_lea.vmem [#allocation5], %s232
          %s235 = ssub.s32 64, 64
          %236 = vsyncadd %s230, %s235
          %s237 = smul.addr %s19, 64
          %s238 = scalar_lea.hbm %s1, %s237
          %s240 = sshll.u32 %s233, 4
          %s241 = int_to_ptr.vmem [resolvable:$true] %s240
          %243 = dma.hbm_to_vmem [thread:$0]  %s238, 64, %s241, %s230
        $region24: #{stacked_gru_forward.1} parent=19 // pred_fallthru
          _
        // Predicated region
        $region25: #{stacked_gru_forward.1} parent=19 // pred_check
          %p244 = pneg %p86
        $region26: #{stacked_gru_forward.1} parent=19 // pred_check_branch
          %246 = sbr.rel (%p244) target = $region28
        $region27: #{stacked_gru_forward.1} parent=19 // pred_region
          %s247 = sand.u32 %s19, 1
          %s248 = scalar_lea.sflag [#allocation6], %s247
          %s249 = sand.u32 %s76, 1
          %s250 = smul.addr %s249, 16
          %s251 = scalar_lea.vmem [#allocation7], %s250
          %s253 = ssub.s32 256, 256
          %254 = vsyncadd %s248, %s253
          %s255 = smul.addr %s19, 4
          %s256 = smul.addr %s255, 64
          %s257 = scalar_lea.hbm %s2, %s256
          %s258 = sshll.u32 %s251, 4
          %s259 = int_to_ptr.vmem [resolvable:$true] %s258
          %264 = dma.hbm_to_vmem [thread:$0]  %s257, 256, %s259, %s248, 64, 64, 4
        $region28: #{stacked_gru_forward.1} parent=19 // pred_fallthru
          _
        // Predicated region
        $region29: #{stacked_gru_forward.1} parent=19 // pred_check
          %p265 = pneg %p112
        $region30: #{stacked_gru_forward.1} parent=19 // pred_check_branch
          %267 = sbr.rel (%p265) target = $region32
        $region31: #{stacked_gru_forward.1} parent=19 // pred_region
          %s268 = sand.u32 %s19, 1
          %s269 = scalar_lea.sflag [#allocation9], %s268
          %s270 = sand.u32 %s102, 1
          %s271 = smul.addr %s270, 16
          %s272 = scalar_lea.vmem [#allocation8], %s271
          %s274 = ssub.s32 256, 256
          %275 = vsyncadd %s269, %s274
          %s276 = smul.addr %s19, 4
          %s277 = smul.addr %s276, 64
          %s278 = scalar_lea.hbm %s3, %s277
          %s279 = sshll.u32 %s272, 4
          %s280 = int_to_ptr.vmem [resolvable:$true] %s279
          %285 = dma.hbm_to_vmem [thread:$0]  %s278, 256, %s280, %s269, 64, 64, 4
        $region32: #{stacked_gru_forward.1} parent=19 // pred_fallthru
          _
        // Predicated region
        $region33: #{stacked_gru_forward.1} parent=19 // pred_check
          %p286 = pneg %p138
        $region34: #{stacked_gru_forward.1} parent=19 // pred_check_branch
          %288 = sbr.rel (%p286) target = $region36
        $region35: #{stacked_gru_forward.1} parent=19 // pred_region
          %p289 = scmp.lt.s32.totalorder %s19, 1
          %s290 = scalar_select %p289, %s19, 1
          %s291 = scalar_lea.vmem %s4, %s290
        $region36: #{stacked_gru_forward.1} parent=19 // pred_fallthru
          _
        // Predicated region
        $region37: #{stacked_gru_forward.1} parent=19 // pred_check
          %p292 = pneg %p164
        $region38: #{stacked_gru_forward.1} parent=19 // pred_check_branch
          %294 = sbr.rel (%p292) target = $region40
        $region39: #{stacked_gru_forward.1} parent=19 // pred_region
          %s295 = sand.u32 %s19, 1
          %s296 = scalar_lea.sflag [#allocation9], %s295
          %s297 = sand.u32 %s154, 1
          %s298 = scalar_lea.vmem [#allocation10], %s297
          %s300 = ssub.s32 16, 16
          %301 = vsyncadd %s296, %s300
          %s302 = smul.addr %s19, 16
          %s303 = scalar_lea.hbm %s5, %s302
          %s305 = sshll.u32 %s298, 4
          %s306 = int_to_ptr.vmem [resolvable:$true] %s305
          %308 = dma.hbm_to_vmem [thread:$0]  %s303, 16, %s306, %s296
        $region40: #{stacked_gru_forward.1} parent=19 // pred_fallthru
          _
      $region20: #{stacked_gru_forward.1} parent=5 // pred_fallthru
        _
      %p309 = scmp.le.s32.totalorder 1, %s19
      %p310 = scmp.lt.s32.totalorder %s19, 3
      %p311 = pnand %p309, %p310
      %p312 = pneg %p311
      // Predicated region
      $region41: #{stacked_gru_forward.1} parent=5 // pred_check
        _
      $region42: #{stacked_gru_forward.1} parent=5 // pred_check_branch
        %314 = sbr.rel (%p311) target = $region44
      $region43: #{stacked_gru_forward.1} parent=5 // pred_region
        %s315 = ssub.s32 %s19, 1
        // Predicated region
        $region45: #{stacked_gru_forward.1} parent=43 // pred_check
          %p316 = pneg %p40
        $region46: #{stacked_gru_forward.1} parent=43 // pred_check_branch
          %318 = sbr.rel (%p316) target = $region48
        $region47: #{stacked_gru_forward.1} parent=43 // pred_region
          %319 = dma.done [#allocation4], 64
        $region48: #{stacked_gru_forward.1} parent=43 // pred_fallthru
          _
        %s320 = sand.u32 %s24, 1
        %s321 = scalar_lea.sflag [#allocation6], %s320
        %s322 = sand.u32 %s53, 1
        %s323 = smul.addr %s322, 4
        %s324 = scalar_lea.vmem [#allocation5], %s323
        // Predicated region
        $region49: #{stacked_gru_forward.1} parent=43 // pred_check
          %p325 = pneg %p66
        $region50: #{stacked_gru_forward.1} parent=43 // pred_check_branch
          %327 = sbr.rel (%p325) target = $region52
        $region51: #{stacked_gru_forward.1} parent=43 // pred_region
          %328 = dma.done %s321, 64
        $region52: #{stacked_gru_forward.1} parent=43 // pred_fallthru
          _
        %s329 = sand.u32 %s24, 1
        %s330 = scalar_lea.sflag [#allocation6], %s329
        %s331 = sand.u32 %s79, 1
        %s332 = smul.addr %s331, 16
        %s333 = scalar_lea.vmem [#allocation7], %s332
        // Predicated region
        $region53: #{stacked_gru_forward.1} parent=43 // pred_check
          %p334 = pneg %p92
        $region54: #{stacked_gru_forward.1} parent=43 // pred_check_branch
          %336 = sbr.rel (%p334) target = $region56
        $region55: #{stacked_gru_forward.1} parent=43 // pred_region
          %337 = dma.done %s330, 256
        $region56: #{stacked_gru_forward.1} parent=43 // pred_fallthru
          _
        %s338 = sand.u32 %s24, 1
        %s339 = scalar_lea.sflag [#allocation9], %s338
        %s340 = sand.u32 %s105, 1
        %s341 = smul.addr %s340, 16
        %s342 = scalar_lea.vmem [#allocation8], %s341
        // Predicated region
        $region57: #{stacked_gru_forward.1} parent=43 // pred_check
          %p343 = pneg %p118
        $region58: #{stacked_gru_forward.1} parent=43 // pred_check_branch
          %345 = sbr.rel (%p343) target = $region60
        $region59: #{stacked_gru_forward.1} parent=43 // pred_region
          %346 = dma.done %s339, 256
        $region60: #{stacked_gru_forward.1} parent=43 // pred_fallthru
          _
        %s347 = sand.u32 %s24, 1
        %s348 = scalar_lea.sflag [#allocation9], %s347
        %s349 = sand.u32 %s157, 1
        %s350 = scalar_lea.vmem [#allocation10], %s349
        // Predicated region
        $region61: #{stacked_gru_forward.1} parent=43 // pred_check
          %p351 = pneg %p170
        $region62: #{stacked_gru_forward.1} parent=43 // pred_check_branch
          %353 = sbr.rel (%p351) target = $region64
        $region63: #{stacked_gru_forward.1} parent=43 // pred_region
          %354 = dma.done %s348, 16
        $region64: #{stacked_gru_forward.1} parent=43 // pred_fallthru
          _
        %p355 = pneg %p40
        %p356 = pneg %p37
        %s357 = sand.u32 %s24, 1
        %s358 = scalar_lea.sflag [#allocation6], %s357
        %s359 = sand.u32 %s53, 1
        %s360 = smul.addr %s359, 4
        %s361 = scalar_lea.vmem [#allocation5], %s360
        %p362 = pneg %p66
        %p363 = pneg %p63
        %s364 = sand.u32 %s24, 1
        %s365 = scalar_lea.sflag [#allocation6], %s364
        %s366 = sand.u32 %s79, 1
        %s367 = smul.addr %s366, 16
        %s368 = scalar_lea.vmem [#allocation7], %s367
        %p369 = pneg %p92
        %p370 = pneg %p89
        %s371 = sand.u32 %s24, 1
        %s372 = scalar_lea.sflag [#allocation9], %s371
        %s373 = sand.u32 %s105, 1
        %s374 = smul.addr %s373, 16
        %s375 = scalar_lea.vmem [#allocation8], %s374
        %p376 = pneg %p118
        %p377 = pneg %p115
        %p378 = scmp.lt.s32.totalorder %s24, 1
        %s379 = scalar_select %p378, %s24, 1
        %s380 = scalar_lea.vmem %s4, %s379
        %p381 = pneg %p144
        %p382 = pneg %p141
        %s383 = sand.u32 %s24, 1
        %s384 = scalar_lea.sflag [#allocation9], %s383
        %s385 = sand.u32 %s157, 1
        %s386 = scalar_lea.vmem [#allocation10], %s385
        %p387 = pneg %p170
        %p388 = pneg %p167
        %p389 = pneg %p196
        %p390 = pneg %p193
        %p391 = scmp.lt.s32.totalorder %s24, 1
        %s392 = scalar_select %p391, %s24, 1
        %s393 = smul.addr %s392, 4
        %s394 = scalar_lea.vmem %s6, %s393
        %p395 = scmp.lt.s32.totalorder %s24, 1
        %s396 = scalar_select %p395, %s24, 1
        %s397 = scalar_lea.vmem %s4, %s396
        %p398 = scmp.lt.s32.totalorder %s24, 1
        %s399 = scalar_select %p398, %s24, 1
        %s400 = smul.addr %s399, 4
        %s401 = scalar_lea.vmem %s6, %s400
        %p403 = scmp.eq.s32.totalorder %s24, 0
        // Predicated region
        $region65: #{stacked_gru_forward.1} parent=43 // pred_check
          %p404 = pneg %p403
        $region66: #{stacked_gru_forward.1} parent=43 // pred_check_branch
          %406 = sbr.rel (%p404) target = $region68
        $region67: #{stacked_gru_forward.1} parent=43 // pred_region
          %vm407 = vcmask 254976
          %408 = vst.msk [vmem:[#allocation2] sm:$0x3] %vm407, 0
          %v409 = vld [vmem:[#allocation3] sm:$0xf]
          %v410 = vpack.c.bf16 %v409, %v409
          %vm411 = vcmask 123904
          %412 = vst.msk [vmem:[#allocation2] sm:$0x3] %vm411, %v410
        $region68: #{stacked_gru_forward.1} parent=43 // pred_fallthru
          _
        %v413 = vld [vmem:[#allocation2] sm:$0x3]
        %v414 = vld [vmem:[%s324] sm:$0xf]
        %v415 = vld [vmem:[%s333] sm:$0xf]
        %v416 = vld [vmem:[%s333 + $0x4] sm:$0xf]
        %v417 = vld [vmem:[%s333 + $0x8] sm:$0xf]
        %v418 = vld [vmem:[%s333 + $0xc] sm:$0xf]
        %v419 = vld [vmem:[%s397] sm:$0x1]
        %v421 = vlaneseq
        %v422 = vshrl.u32 %v421, 7
        %v423 = vsub.s32 0, %v422
        %v424 = vrot.slane %v419, %v423
        %v430 = vunpack.c.l.b16 %v415
        %v431 = vunpack.c.l.b16 %v416
        %v432 = vunpack.c.l.b16 %v417
        %v433 = vunpack.c.l.b16 %v418
        %v434 = vpack.c.b16 %v431, %v430
        %v435 = vpack.c.b16 %v433, %v432
        %vm438 = vcmask 261120
        %v440 = vsel %vm438, %v413, 0
        %442 = vmatprep.subr.bf16.mxu0 0
        %443 = vmatpush1.bf16.msra.mxu0 0
        %444 = vmatprep.subr.bf16.mxu0 0
        %445 = vmatpush1.bf16.msra.mxu0 0
        %446 = vmatprep.subr.bf16.mxu0 0
        %447 = vmatpush1.bf16.msra.mxu0 0
        %448 = vmatprep.subr.bf16.mxu0 0
        %449 = vmatpush1.bf16.msra.mxu0 0
        %450 = vmatprep.subr.bf16.mxu0 0
        %451 = vmatpush1.bf16.msra.mxu0 0
        %452 = vmatprep.subr.bf16.mxu0 0
        %453 = vmatpush1.bf16.msra.mxu0 0
        %454 = vmatprep.subr.bf16.mxu0 0
        %455 = vmatpush1.bf16.msra.mxu0 %v435
        %456 = vmatprep.subr.bf16.mxu0 0
        %457 = vmatpush1.bf16.msra.mxu0 %v434
        %458 = vmatprep.subr.bf16.mxu0 0
        %459 = vmatpush2.bf16.msra.mxu0 0
        %460 = vmatprep.subr.bf16.mxu0 0
        %461 = vmatpush2.bf16.msra.mxu0 0
        %462 = vmatprep.subr.bf16.mxu0 0
        %463 = vmatpush2.bf16.msra.mxu0 0
        %464 = vmatprep.subr.bf16.mxu0 0
        %465 = vmatpush2.bf16.msra.mxu0 0
        %466 = vmatprep.subr.bf16.mxu0 0
        %467 = vmatpush2.bf16.msra.mxu0 0
        %468 = vmatprep.subr.bf16.mxu0 0
        %469 = vmatpush2.bf16.msra.mxu0 0
        %470 = vmatprep.subr.bf16.mxu0 0
        %471 = vmatpush2.bf16.msra.mxu0 0
        %472 = vmatprep.subr.bf16.mxu0 0
        %473 = vmatpush2.bf16.msra.mxu0 0
        %474 = vmatprep.mubr.bf16.mxu0 0
        %475 = vmatmul.mubr.bf16.gmra.mxu0 %v440
        %v476 = vpop.f32.mrf.mxu0
        %v477 = vadd.f32 %v424, %v476
        %v478 = vpop.f32.mrf.mxu0
        %v479 = vpop.f32.mrf.mxu0
        %v480 = vpop.f32.mrf.mxu0
        %481 = vdwg.mxu0
        %v482 = vpack.c.bf16 %v414, %v414
        %v483 = vld [vmem:[%s342] sm:$0xf]
        %v484 = vld [vmem:[%s342 + $0x4] sm:$0xf]
        %v485 = vld [vmem:[%s342 + $0x8] sm:$0xf]
        %v486 = vld [vmem:[%s342 + $0xc] sm:$0xf]
        %v487 = vld [vmem:[%s350] sm:$0x1]
        %v489 = vlaneseq
        %v490 = vshrl.u32 %v489, 7
        %v491 = vsub.s32 0, %v490
        %v492 = vrot.slane %v487, %v491
        %v498 = vunpack.c.l.b16 %v483
        %v499 = vunpack.c.l.b16 %v484
        %v500 = vunpack.c.l.b16 %v485
        %v501 = vunpack.c.l.b16 %v486
        %v502 = vpack.c.b16 %v499, %v498
        %v503 = vpack.c.b16 %v501, %v500
        %v507 = vsel %vm438, %v482, 0
        %509 = vmatprep.subr.bf16.mxu0 0
        %510 = vmatpush1.bf16.msra.mxu0 0
        %511 = vmatprep.subr.bf16.mxu0 0
        %512 = vmatpush1.bf16.msra.mxu0 0
        %513 = vmatprep.subr.bf16.mxu0 0
        %514 = vmatpush1.bf16.msra.mxu0 0
        %515 = vmatprep.subr.bf16.mxu0 0
        %516 = vmatpush1.bf16.msra.mxu0 0
        %517 = vmatprep.subr.bf16.mxu0 0
        %518 = vmatpush1.bf16.msra.mxu0 0
        %519 = vmatprep.subr.bf16.mxu0 0
        %520 = vmatpush1.bf16.msra.mxu0 0
        %521 = vmatprep.subr.bf16.mxu0 0
        %522 = vmatpush1.bf16.msra.mxu0 %v503
        %523 = vmatprep.subr.bf16.mxu0 0
        %524 = vmatpush1.bf16.msra.mxu0 %v502
        %525 = vmatprep.subr.bf16.mxu0 0
        %526 = vmatpush2.bf16.msra.mxu0 0
        %527 = vmatprep.subr.bf16.mxu0 0
        %528 = vmatpush2.bf16.msra.mxu0 0
        %529 = vmatprep.subr.bf16.mxu0 0
        %530 = vmatpush2.bf16.msra.mxu0 0
        %531 = vmatprep.subr.bf16.mxu0 0
        %532 = vmatpush2.bf16.msra.mxu0 0
        %533 = vmatprep.subr.bf16.mxu0 0
        %534 = vmatpush2.bf16.msra.mxu0 0
        %535 = vmatprep.subr.bf16.mxu0 0
        %536 = vmatpush2.bf16.msra.mxu0 0
        %537 = vmatprep.subr.bf16.mxu0 0
        %538 = vmatpush2.bf16.msra.mxu0 0
        %539 = vmatprep.subr.bf16.mxu0 0
        %540 = vmatpush2.bf16.msra.mxu0 0
        %541 = vmatprep.mubr.bf16.mxu0 0
        %542 = vmatmul.mubr.bf16.gmra.mxu0 %v507
        %v543 = vpop.f32.mrf.mxu0
        %v544 = vadd.f32 %v492, %v543
        %v545 = vpop.f32.mrf.mxu0
        %v546 = vpop.f32.mrf.mxu0
        %v547 = vpop.f32.mrf.mxu0
        %548 = vdwg.mxu0
        %v549 = vadd.f32 %v477, %v544
        %v550 = vxor.u32 %v549, 2147483648
        %v551 = vmul.f32 %v550, 1.442695
        %v552 = vpow.pop %v551
        %v553 = vadd.f32 %v552, 1.0
        %v554 = vrcp.pop %v553
        %v555 = vmul.f32 1.0, %v554
        %557 = vrot.lane.b32.xlu0 %v544, 64
        %v558 = vpop.permute.xlu0 %557
        %v560 = vmul.f32 %v555, %v558
        %562 = vrot.lane.b32.xlu0 %v560, 64
        %v563 = vpop.permute.xlu0 %562
        %v565 = vadd.f32 %v477, %v563
        %v566 = vtanh.pop %v565
        %v567 = vsub.f32 1.0, %v555
        %569 = vrot.lane.b32.xlu0 %v566, 96
        %v570 = vpop.permute.xlu0 %569
        %v572 = vmul.f32 %v567, %v570
        %574 = vrot.lane.b32.xlu0 %v414, 32
        %v575 = vpop.permute.xlu0 %574
        %v577 = vmul.f32 %v555, %v575
        %v578 = vadd.f32 %v572, %v577
        %580 = vrot.lane.b32.xlu0 %v578, 96
        %v581 = vpop.permute.xlu0 %580
        %vm583 = vcmask 257024
        %584 = vst.msk [vmem:[%s401] sm:$0xf] %vm583, %v581
        %s585 = sadd.s32 %s24, 1
        %p586 = scmp.lt.s32.totalorder %s585, 2
        // Predicated region
        $region69: #{stacked_gru_forward.1} parent=43 // pred_check
          %p587 = pneg %p586
        $region70: #{stacked_gru_forward.1} parent=43 // pred_check_branch
          %589 = sbr.rel (%p587) target = $region72
        $region71: #{stacked_gru_forward.1} parent=43 // pred_region
          %v590 = vpack.c.bf16 %v578, %v578
          %v593 = vunpack.c.l.s4 1983009808
          %v594 = vunpack.c.0.s8 %v593
          %v595 = vlaneseq
          %v596 = vshrl.u32 %v595, 7
          %v597 = vsub.s32 %v594, %v596
          %v598 = vrot.slane %v590, %v597
          %599 = vrot.lane.b32.xlu0 %v598, 96
          %v600 = vpop.permute.xlu0 %599
          %vm602 = vcmask 254976
          %603 = vst.msk [vmem:[#allocation2] sm:$0x3] %vm602, %v600
        $region72: #{stacked_gru_forward.1} parent=43 // pred_fallthru
          _
        %p604 = scmp.lt.s32.totalorder %s24, 1
        %s605 = scalar_select %p604, %s24, 1
        %s606 = smul.addr %s605, 4
        %s607 = scalar_lea.vmem %s6, %s606
        // Predicated region
        $region73: #{stacked_gru_forward.1} parent=43 // pred_check
          %p608 = pneg %p193
        $region74: #{stacked_gru_forward.1} parent=43 // pred_check_branch
          %610 = sbr.rel (%p608) target = $region76
        $region75: #{stacked_gru_forward.1} parent=43 // pred_region
          _
        $region76: #{stacked_gru_forward.1} parent=43 // pred_fallthru
          _
      $region44: #{stacked_gru_forward.1} parent=5 // pred_fallthru
        _
      %p611 = scmp.le.s32.totalorder 2, %s19
      // Predicated region
      $region77: #{stacked_gru_forward.1} parent=5 // pred_check
        %p612 = pneg %p611
      $region78: #{stacked_gru_forward.1} parent=5 // pred_check_branch
        %614 = sbr.rel (%p612) target = $region80
      $region79: #{stacked_gru_forward.1} parent=5 // pred_region
        %s615 = ssub.s32 %s19, 2
        // Predicated region
        $region81: #{stacked_gru_forward.1} parent=79 // pred_check
          %p616 = pneg %p199
        $region82: #{stacked_gru_forward.1} parent=79 // pred_check_branch
          %618 = sbr.rel (%p616) target = $region84
        $region83: #{stacked_gru_forward.1} parent=79 // pred_region
          %p619 = scmp.lt.s32.totalorder %s25, 1
          %s620 = scalar_select %p619, %s25, 1
          %s621 = smul.addr %s620, 4
          %s622 = scalar_lea.vmem %s6, %s621
        $region84: #{stacked_gru_forward.1} parent=79 // pred_fallthru
          _
      $region80: #{stacked_gru_forward.1} parent=5 // pred_fallthru
        _
    $region6: #{stacked_gru_forward.1} parent=1 // loop_footer
      %s23 = sadd.s32 1, %s19
    $region7: #{stacked_gru_forward.1} parent=1 // loop_footer_branch
      %18 = sbr.rel target = $region3
    $region8: #{stacked_gru_forward.1} parent=1 // loop_exit
      _
    %623 = vsyncpa [#allocation4], 1
    %s624 = scalar_lea.sflag [#allocation4], 1
    %625 = vsyncpa %s624, 1
    %626 = vsyncpa [#allocation6], 1
    %s627 = scalar_lea.sflag [#allocation6], 1
    %628 = vsyncpa %s627, 1
    %629 = vsyncpa [#allocation9], 1
    %s630 = scalar_lea.sflag [#allocation9], 1
    %631 = vsyncpa %s630, 1

</llo_original>
